<compile_context>
chip_gen: v7x
topology: tpu7x:2x2x1
jax: 0.10.0
libtpu: 0.0.40
codegen_flags: <defaults>
</compile_context>

<pallas_src>
import jax
import jax.numpy as jnp
from jax.experimental import pallas as pl
from jax.experimental.pallas import tpu as pltpu

IN_FEATURES = 784
OUT_FEATURES = 10
OUT_PADDED = 128          # lane-dense output width (multiple of 128)
DEFAULT_TM = 512          # batch tile for large batches (multiple of 8)


def linear_kernel(x_ref, w_ref, b_ref, o_ref):
    # One MXU matmul per batch tile + bias broadcast; f32 accumulation.
    acc = jnp.dot(x_ref[...], w_ref[...], preferred_element_type=jnp.float32)
    o_ref[...] = acc + b_ref[...]        # (tm, 128) unmasked lane-dense store


def mnist_logistic_forward(x, w_t, b, *, tm=DEFAULT_TM):
    """x: (B, 784) f32, w_t: (784, 10) f32, b: (10,) f32 -> (B, 10) f32."""
    B = x.shape[0]
    tm = max(8, (tm // 8) * 8)           # keep tile sublane-aligned

    # Zero-pad weight/bias to a lane-dense 128-wide output (padded columns are
    # all-zero, so the extra output columns are exactly 0 and get sliced away).
    w_pad = jnp.zeros((IN_FEATURES, OUT_PADDED), dtype=jnp.float32)
    w_pad = w_pad.at[:, :OUT_FEATURES].set(w_t.astype(jnp.float32))
    b_pad = jnp.zeros((1, OUT_PADDED), dtype=jnp.float32)
    b_pad = b_pad.at[0, :OUT_FEATURES].set(b.astype(jnp.float32))

    # Adaptive batch tiling: single invocation for small B, tiled grid with
    # VMEM-resident weights for large B.
    if B <= tm:
        tm_eff = ((B + 7) // 8) * 8      # sublane-align small batches
        b_padded = tm_eff
    else:
        tm_eff = tm
        b_padded = pl.cdiv(B, tm_eff) * tm_eff

    if b_padded != B:
        x_in = jnp.zeros((b_padded, IN_FEATURES), dtype=jnp.float32)
        x_in = x_in.at[:B].set(x.astype(jnp.float32))
    else:
        x_in = x.astype(jnp.float32)

    grid = (b_padded // tm_eff,)

    cost = pl.CostEstimate(
        flops=2 * b_padded * IN_FEATURES * OUT_PADDED,
        transcendentals=0,
        bytes_accessed=4 * (x_in.size + w_pad.size + b_pad.size
                            + b_padded * OUT_PADDED),
    )

    out_padded = pl.pallas_call(
        linear_kernel,
        out_shape=jax.ShapeDtypeStruct((b_padded, OUT_PADDED), jnp.float32),
        grid_spec=pltpu.PrefetchScalarGridSpec(
            num_scalar_prefetch=0,
            grid=grid,
            in_specs=[
                # x: one batch tile per grid step
                pl.BlockSpec((tm_eff, IN_FEATURES), lambda i: (i, 0)),
                # weight + bias: constant block -> stay resident in VMEM
                pl.BlockSpec((IN_FEATURES, OUT_PADDED), lambda i: (0, 0)),
                pl.BlockSpec((1, OUT_PADDED), lambda i: (0, 0)),
            ],
            out_specs=pl.BlockSpec((tm_eff, OUT_PADDED), lambda i: (i, 0)),
        ),
        compiler_params=pltpu.CompilerParams(
            dimension_semantics=("parallel",),   # batch tiles split across TCs
        ),
        cost_estimate=cost,
    )(x_in, w_pad, b_pad)

    return out_padded[:B, :OUT_FEATURES]


def init_params(key):
    # Deterministic init mimicking nn.Linear defaults:
    # U(-1/sqrt(in_features), 1/sqrt(in_features)) for both weight and bias.
    kw, kb = jax.random.split(key)
    bound = 1.0 / (IN_FEATURES ** 0.5)
    w = jax.random.uniform(kw, (OUT_FEATURES, IN_FEATURES), jnp.float32,
                           minval=-bound, maxval=bound)
    b = jax.random.uniform(kb, (OUT_FEATURES,), jnp.float32,
                           minval=-bound, maxval=bound)
    return w, b


if __name__ == "__main__":
    key = jax.random.PRNGKey(0)
    kx, kp, kx2 = jax.random.split(key, 3)

    w, b = init_params(kp)       # w: (10, 784), b: (10,) — torch layout
    w_t = w.T                    # pre-transpose once in plain JAX (glue)

    # 1) Small-batch path (matches `bs = 64` in the reference script):
    bs = 64
    x = jax.random.normal(kx, (bs, IN_FEATURES), dtype=jnp.float32)
    out = jax.block_until_ready(mnist_logistic_forward(x, w_t, b))
    ref = x @ w.T + b
    assert out.shape == (bs, OUT_FEATURES)
    assert jnp.allclose(out, ref, atol=1e-4, rtol=1e-4)

    # 2) Tiled path (exercises the batch grid + VMEM-resident weights,
    #    including a batch size that is not a multiple of the tile):
    big_bs = 320
    x_big = jax.random.normal(kx2, (big_bs, IN_FEATURES), dtype=jnp.float32)
    out_big = jax.block_until_ready(
        mnist_logistic_forward(x_big, w_t, b, tm=128))
    ref_big = x_big @ w.T + b
    assert out_big.shape == (big_bs, OUT_FEATURES)
    assert jnp.allclose(out_big, ref_big, atol=1e-4, rtol=1e-4)

    print("KERNEL_OK")
</pallas_src>

<mosaic_0001>
module attributes {stable_mosaic.version = 11 : i64} {
  func.func @linear_kernel(%arg0: i32, %arg1: memref<64x784xf32, #tpu.memory_space<vmem>>, %arg2: memref<784x128xf32, #tpu.memory_space<vmem>>, %arg3: memref<1x128xf32, #tpu.memory_space<vmem>>, %arg4: memref<64x128xf32, #tpu.memory_space<vmem>>) attributes {dimension_semantics = [#tpu.dimension_semantics<parallel>], iteration_bounds = array<i64: 1>, scalar_prefetch = 0 : i64, scratch_operands = 0 : i64, tpu.core_type = #tpu.core_type<tc>, window_params = [{transform_indices = @transform_0, window_bounds = array<i64: 64, 784>}, {pipeline_mode = #tpu.pipeline_mode<synchronous>, transform_indices = @transform_1, window_bounds = array<i64: 784, 128>}, {pipeline_mode = #tpu.pipeline_mode<synchronous>, transform_indices = @transform_2, window_bounds = array<i64: 1, 128>}, {transform_indices = @transform_3, window_bounds = array<i64: 64, 128>}]} {
    %c0 = arith.constant 0 : index
    %c0_0 = arith.constant 0 : index
    %0 = vector.load %arg1[%c0, %c0_0] : memref<64x784xf32, #tpu.memory_space<vmem>>, vector<64x784xf32>
    %c0_1 = arith.constant 0 : index
    %c0_2 = arith.constant 0 : index
    %1 = vector.load %arg2[%c0_1, %c0_2] : memref<784x128xf32, #tpu.memory_space<vmem>>, vector<784x128xf32>
    %cst = arith.constant dense<0.000000e+00> : vector<64x128xf32>
    %2 = tpu.matmul %0, %1, %cst {dimension_numbers = #tpu.dot_dimension_numbers<[1], [0], [0], [1], [0, 0, 1, 1], [], []>} : vector<64x784xf32>, vector<784x128xf32>, vector<64x128xf32> -> vector<64x128xf32>
    %c0_3 = arith.constant 0 : index
    %c0_4 = arith.constant 0 : index
    %3 = vector.load %arg3[%c0_3, %c0_4] : memref<1x128xf32, #tpu.memory_space<vmem>>, vector<1x128xf32>
    %4 = vector.broadcast %3 : vector<1x128xf32> to vector<64x128xf32>
    %5 = arith.addf %2, %4 : vector<64x128xf32>
    %c0_5 = arith.constant 0 : index
    %c0_6 = arith.constant 0 : index
    %6 = vector.load %arg4[%c0_5, %c0_6] : memref<64x128xf32, #tpu.memory_space<vmem>>, vector<64x128xf32>
    tpu.vector_store %arg4[%c0_5, %c0_6], %5 {strides = array<i32>} : memref<64x128xf32, #tpu.memory_space<vmem>>, vector<64x128xf32>,
    return
  }
  func.func @transform_0(%arg0: i32) -> (i32, i32) {
    %c0_i32 = arith.constant 0 : i32
    %c0_i32_0 = arith.constant 0 : i32
    return %arg0, %c0_i32 : i32, i32
  }
  func.func @transform_1(%arg0: i32) -> (i32, i32) {
    %c0_i32 = arith.constant 0 : i32
    %c0_i32_0 = arith.constant 0 : i32
    %c0_i32_1 = arith.constant 0 : i32
    return %c0_i32, %c0_i32_0 : i32, i32
  }
  func.func @transform_2(%arg0: i32) -> (i32, i32) {
    %c0_i32 = arith.constant 0 : i32
    %c0_i32_0 = arith.constant 0 : i32
    %c0_i32_1 = arith.constant 0 : i32
    return %c0_i32, %c0_i32_0 : i32, i32
  }
  func.func @transform_3(%arg0: i32) -> (i32, i32) {
    %c0_i32 = arith.constant 0 : i32
    %c0_i32_0 = arith.constant 0 : i32
    return %arg0, %c0_i32 : i32, i32
  }
}

</mosaic_0001>

<llo_original>
// kernel: tpu_custom_call.1
$region0: #{tpu_custom_call.1}
  #allocation0 [shape = 'u32[]', space=smem, size = 0x4, offset = 0x4, fixed_abs, tag = 'smem constant byte address 0x4 - core index']
  #allocation1 [shape = 'u32[144,128]{1,0:T(1,128)}', space=vmem, size = 0x12000, scoped, tag = 'internal scratch']
  %s0 = inlined_call_operand.hbm [shape: f32[64,784], index: 0, kind: input, shape index: {}]
  %s1 = inlined_call_operand.hbm [shape: f32[784,128], index: 1, kind: input, shape index: {}]
  %s2 = inlined_call_operand.vmem [shape: f32[1,128], index: 2, kind: input, shape index: {}]
  %s3 = inlined_call_operand.hbm [shape: f32[64,128], index: 3, kind: output, shape index: {}]
  %s4 = sld [smem:[#allocation0]]
  $region30: #{tpu_custom_call.1} parent=0
    _
  %s6 = ssub.s32 1, %s4
  %s7 = scalar_select 0, %s6, %s4
  $region1: #{tpu_custom_call.1} parent=0
    #allocation2 [shape = 'u8[229376]{0}', space=vmem, size = 0x38000, scoped, tag = 'input window, operand 0, single buffered']
    #allocation3 [shape = 's32[1]{0}', space=sflag, size = 0x4, scoped, tag = 'scoped memory for tpu_custom_call.1']
    #allocation4 [shape = 's32[1]{0}', space=sflag, size = 0x4, scoped, tag = 'scoped memory for tpu_custom_call.1']
    #allocation5 [shape = 'u8[401408]{0}', space=vmem, size = 0x62000, scoped, tag = 'input window, operand 1, single buffered']
    #allocation6 [shape = 's32[1]{0}', space=sflag, size = 0x4, scoped, tag = 'scoped memory for tpu_custom_call.1']
    #allocation7 [shape = 'u8[32768]{0}', space=vmem, size = 0x8000, scoped, tag = 'output window, operand 0, single buffered']
    %8 = vsyncpa [#allocation3], 0
    %9 = vsyncpa [#allocation6], 0
    %10 = vsyncpa [#allocation4], 0
    // Predicated region
    $region2: #{tpu_custom_call.1} parent=1 // pred_check
      _
    $region3: #{tpu_custom_call.1} parent=1 // pred_check_branch
      %12 = sbr.rel (0) target = $region5
    $region4: #{tpu_custom_call.1} parent=1 // pred_region
      %s14 = ssub.s32 7168, 7168
      %15 = vsyncadd [#allocation3], %s14
      %s16 = sshll.u32 [#allocation2], 4
      %s17 = int_to_ptr.vmem [resolvable:$true] %s16
      %22 = dma.hbm_to_vmem [thread:$0]  %s0, 7168, %s17, [#allocation3], 896, 896, 56
    $region5: #{tpu_custom_call.1} parent=1 // pred_fallthru
      _
    // Predicated region
    $region6: #{tpu_custom_call.1} parent=1 // pred_check
      _
    $region7: #{tpu_custom_call.1} parent=1 // pred_check_branch
      %24 = sbr.rel (0) target = $region9
    $region8: #{tpu_custom_call.1} parent=1 // pred_region
      %s26 = ssub.s32 12544, 12544
      %27 = vsyncadd [#allocation6], %s26
      %s28 = sshll.u32 [#allocation5], 4
      %s29 = int_to_ptr.vmem [resolvable:$true] %s28
      %34 = dma.hbm_to_vmem [thread:$0]  %s1, 12544, %s29, [#allocation6], 128, 128, 8
    $region9: #{tpu_custom_call.1} parent=1 // pred_fallthru
      _
    // Predicated region
    $region10: #{tpu_custom_call.1} parent=1 // pred_check
      _
    $region11: #{tpu_custom_call.1} parent=1 // pred_check_branch
      %36 = sbr.rel (0) target = $region13
    $region12: #{tpu_custom_call.1} parent=1 // pred_region
      _
    $region13: #{tpu_custom_call.1} parent=1 // pred_fallthru
      _
    // Predicated region
    $region14: #{tpu_custom_call.1} parent=1 // pred_check
      _
    $region15: #{tpu_custom_call.1} parent=1 // pred_check_branch
      %38 = sbr.rel (0) target = $region17
    $region16: #{tpu_custom_call.1} parent=1 // pred_region
      %39 = dma.done [#allocation3], 7168
    $region17: #{tpu_custom_call.1} parent=1 // pred_fallthru
      _
    // Predicated region
    $region18: #{tpu_custom_call.1} parent=1 // pred_check
      _
    $region19: #{tpu_custom_call.1} parent=1 // pred_check_branch
      %41 = sbr.rel (0) target = $region21
    $region20: #{tpu_custom_call.1} parent=1 // pred_region
      %42 = dma.done [#allocation6], 12544
    $region21: #{tpu_custom_call.1} parent=1 // pred_fallthru
      _
    %v43 = vld [vmem:[#allocation2] sm:$0xff]
    %v44 = vld [vmem:[#allocation2 + $0x8] sm:$0xff]
    %v45 = vld [vmem:[#allocation2 + $0x10] sm:$0xff]
    %v46 = vld [vmem:[#allocation2 + $0x18] sm:$0xff]
    %v47 = vld [vmem:[#allocation2 + $0x20] sm:$0xff]
    %v48 = vld [vmem:[#allocation2 + $0x28] sm:$0xff]
    %v49 = vld [vmem:[#allocation2 + $0x30] sm:$0xff]
    %v50 = vld [vmem:[#allocation2 + $0x38] sm:$0xff]
    %v51 = vld [vmem:[#allocation2 + $0x40] sm:$0xff]
    %v52 = vld [vmem:[#allocation2 + $0x48] sm:$0xff]
    %v53 = vld [vmem:[#allocation2 + $0x50] sm:$0xff]
    %v54 = vld [vmem:[#allocation2 + $0x58] sm:$0xff]
    %v55 = vld [vmem:[#allocation2 + $0x60] sm:$0xff]
    %v56 = vld [vmem:[#allocation2 + $0x68] sm:$0xff]
    %v57 = vld [vmem:[#allocation2 + $0x70] sm:$0xff]
    %v58 = vld [vmem:[#allocation2 + $0x78] sm:$0xff]
    %v59 = vld [vmem:[#allocation2 + $0x80] sm:$0xff]
    %v60 = vld [vmem:[#allocation2 + $0x88] sm:$0xff]
    %v61 = vld [vmem:[#allocation2 + $0x90] sm:$0xff]
    %v62 = vld [vmem:[#allocation2 + $0x98] sm:$0xff]
    %v63 = vld [vmem:[#allocation2 + $0xa0] sm:$0xff]
    %v64 = vld [vmem:[#allocation2 + $0xa8] sm:$0xff]
    %v65 = vld [vmem:[#allocation2 + $0xb0] sm:$0xff]
    %v66 = vld [vmem:[#allocation2 + $0xb8] sm:$0xff]
    %v67 = vld [vmem:[#allocation2 + $0xc0] sm:$0xff]
    %v68 = vld [vmem:[#allocation2 + $0xc8] sm:$0xff]
    %v69 = vld [vmem:[#allocation2 + $0xd0] sm:$0xff]
    %v70 = vld [vmem:[#allocation2 + $0xd8] sm:$0xff]
    %v71 = vld [vmem:[#allocation2 + $0xe0] sm:$0xff]
    %v72 = vld [vmem:[#allocation2 + $0xe8] sm:$0xff]
    %v73 = vld [vmem:[#allocation2 + $0xf0] sm:$0xff]
    %v74 = vld [vmem:[#allocation2 + $0xf8] sm:$0xff]
    %v75 = vld [vmem:[#allocation2 + $0x100] sm:$0xff]
    %v76 = vld [vmem:[#allocation2 + $0x108] sm:$0xff]
    %v77 = vld [vmem:[#allocation2 + $0x110] sm:$0xff]
    %v78 = vld [vmem:[#allocation2 + $0x118] sm:$0xff]
    %v79 = vld [vmem:[#allocation2 + $0x120] sm:$0xff]
    %v80 = vld [vmem:[#allocation2 + $0x128] sm:$0xff]
    %v81 = vld [vmem:[#allocation2 + $0x130] sm:$0xff]
    %v82 = vld [vmem:[#allocation2 + $0x138] sm:$0xff]
    %v83 = vld [vmem:[#allocation2 + $0x140] sm:$0xff]
    %v84 = vld [vmem:[#allocation2 + $0x148] sm:$0xff]
    %v85 = vld [vmem:[#allocation2 + $0x150] sm:$0xff]
    %v86 = vld [vmem:[#allocation2 + $0x158] sm:$0xff]
    %v87 = vld [vmem:[#allocation2 + $0x160] sm:$0xff]
    %v88 = vld [vmem:[#allocation2 + $0x168] sm:$0xff]
    %v89 = vld [vmem:[#allocation2 + $0x170] sm:$0xff]
    %v90 = vld [vmem:[#allocation2 + $0x178] sm:$0xff]
    %v91 = vld [vmem:[#allocation2 + $0x180] sm:$0xff]
    %v92 = vld [vmem:[#allocation2 + $0x188] sm:$0xff]
    %v93 = vld [vmem:[#allocation2 + $0x190] sm:$0xff]
    %v94 = vld [vmem:[#allocation2 + $0x198] sm:$0xff]
    %v95 = vld [vmem:[#allocation2 + $0x1a0] sm:$0xff]
    %v96 = vld [vmem:[#allocation2 + $0x1a8] sm:$0xff]
    %v97 = vld [vmem:[#allocation2 + $0x1b0] sm:$0xff]
    %v98 = vld [vmem:[#allocation2 + $0x1b8] sm:$0xff]
    %v99 = vld [vmem:[#allocation5] sm:$0xff]
    %v100 = vld [vmem:[#allocation5 + $0x8] sm:$0xff]
    %v101 = vld [vmem:[#allocation5 + $0x10] sm:$0xff]
    %v102 = vld [vmem:[#allocation5 + $0x18] sm:$0xff]
    %v103 = vld [vmem:[#allocation5 + $0x20] sm:$0xff]
    %v104 = vld [vmem:[#allocation5 + $0x28] sm:$0xff]
    %v105 = vld [vmem:[#allocation5 + $0x30] sm:$0xff]
    %v106 = vld [vmem:[#allocation5 + $0x38] sm:$0xff]
    %v107 = vld [vmem:[#allocation5 + $0x40] sm:$0xff]
    %v108 = vld [vmem:[#allocation5 + $0x48] sm:$0xff]
    %v109 = vld [vmem:[#allocation5 + $0x50] sm:$0xff]
    %v110 = vld [vmem:[#allocation5 + $0x58] sm:$0xff]
    %v111 = vld [vmem:[#allocation5 + $0x60] sm:$0xff]
    %v112 = vld [vmem:[#allocation5 + $0x68] sm:$0xff]
    %v113 = vld [vmem:[#allocation5 + $0x70] sm:$0xff]
    %v114 = vld [vmem:[#allocation5 + $0x78] sm:$0xff]
    %v115 = vld [vmem:[#allocation5 + $0x80] sm:$0xff]
    %v116 = vld [vmem:[#allocation5 + $0x88] sm:$0xff]
    %v117 = vld [vmem:[#allocation5 + $0x90] sm:$0xff]
    %v118 = vld [vmem:[#allocation5 + $0x98] sm:$0xff]
    %v119 = vld [vmem:[#allocation5 + $0xa0] sm:$0xff]
    %v120 = vld [vmem:[#allocation5 + $0xa8] sm:$0xff]
    %v121 = vld [vmem:[#allocation5 + $0xb0] sm:$0xff]
    %v122 = vld [vmem:[#allocation5 + $0xb8] sm:$0xff]
    %v123 = vld [vmem:[#allocation5 + $0xc0] sm:$0xff]
    %v124 = vld [vmem:[#allocation5 + $0xc8] sm:$0xff]
    %v125 = vld [vmem:[#allocation5 + $0xd0] sm:$0xff]
    %v126 = vld [vmem:[#allocation5 + $0xd8] sm:$0xff]
    %v127 = vld [vmem:[#allocation5 + $0xe0] sm:$0xff]
    %v128 = vld [vmem:[#allocation5 + $0xe8] sm:$0xff]
    %v129 = vld [vmem:[#allocation5 + $0xf0] sm:$0xff]
    %v130 = vld [vmem:[#allocation5 + $0xf8] sm:$0xff]
    %v131 = vld [vmem:[#allocation5 + $0x100] sm:$0xff]
    %v132 = vld [vmem:[#allocation5 + $0x108] sm:$0xff]
    %v133 = vld [vmem:[#allocation5 + $0x110] sm:$0xff]
    %v134 = vld [vmem:[#allocation5 + $0x118] sm:$0xff]
    %v135 = vld [vmem:[#allocation5 + $0x120] sm:$0xff]
    %v136 = vld [vmem:[#allocation5 + $0x128] sm:$0xff]
    %v137 = vld [vmem:[#allocation5 + $0x130] sm:$0xff]
    %v138 = vld [vmem:[#allocation5 + $0x138] sm:$0xff]
    %v139 = vld [vmem:[#allocation5 + $0x140] sm:$0xff]
    %v140 = vld [vmem:[#allocation5 + $0x148] sm:$0xff]
    %v141 = vld [vmem:[#allocation5 + $0x150] sm:$0xff]
    %v142 = vld [vmem:[#allocation5 + $0x158] sm:$0xff]
    %v143 = vld [vmem:[#allocation5 + $0x160] sm:$0xff]
    %v144 = vld [vmem:[#allocation5 + $0x168] sm:$0xff]
    %v145 = vld [vmem:[#allocation5 + $0x170] sm:$0xff]
    %v146 = vld [vmem:[#allocation5 + $0x178] sm:$0xff]
    %v147 = vld [vmem:[#allocation5 + $0x180] sm:$0xff]
    %v148 = vld [vmem:[#allocation5 + $0x188] sm:$0xff]
    %v149 = vld [vmem:[#allocation5 + $0x190] sm:$0xff]
    %v150 = vld [vmem:[#allocation5 + $0x198] sm:$0xff]
    %v151 = vld [vmem:[#allocation5 + $0x1a0] sm:$0xff]
    %v152 = vld [vmem:[#allocation5 + $0x1a8] sm:$0xff]
    %v153 = vld [vmem:[#allocation5 + $0x1b0] sm:$0xff]
    %v154 = vld [vmem:[#allocation5 + $0x1b8] sm:$0xff]
    %v155 = vld [vmem:[#allocation5 + $0x1c0] sm:$0xff]
    %v156 = vld [vmem:[#allocation5 + $0x1c8] sm:$0xff]
    %v157 = vld [vmem:[#allocation5 + $0x1d0] sm:$0xff]
    %v158 = vld [vmem:[#allocation5 + $0x1d8] sm:$0xff]
    %v159 = vld [vmem:[#allocation5 + $0x1e0] sm:$0xff]
    %v160 = vld [vmem:[#allocation5 + $0x1e8] sm:$0xff]
    %v161 = vld [vmem:[#allocation5 + $0x1f0] sm:$0xff]
    %v162 = vld [vmem:[#allocation5 + $0x1f8] sm:$0xff]
    %v163 = vld [vmem:[#allocation5 + $0x200] sm:$0xff]
    %v164 = vld [vmem:[#allocation5 + $0x208] sm:$0xff]
    %v165 = vld [vmem:[#allocation5 + $0x210] sm:$0xff]
    %v166 = vld [vmem:[#allocation5 + $0x218] sm:$0xff]
    %v167 = vld [vmem:[#allocation5 + $0x220] sm:$0xff]
    %v168 = vld [vmem:[#allocation5 + $0x228] sm:$0xff]
    %v169 = vld [vmem:[#allocation5 + $0x230] sm:$0xff]
    %v170 = vld [vmem:[#allocation5 + $0x238] sm:$0xff]
    %v171 = vld [vmem:[#allocation5 + $0x240] sm:$0xff]
    %v172 = vld [vmem:[#allocation5 + $0x248] sm:$0xff]
    %v173 = vld [vmem:[#allocation5 + $0x250] sm:$0xff]
    %v174 = vld [vmem:[#allocation5 + $0x258] sm:$0xff]
    %v175 = vld [vmem:[#allocation5 + $0x260] sm:$0xff]
    %v176 = vld [vmem:[#allocation5 + $0x268] sm:$0xff]
    %v177 = vld [vmem:[#allocation5 + $0x270] sm:$0xff]
    %v178 = vld [vmem:[#allocation5 + $0x278] sm:$0xff]
    %v179 = vld [vmem:[#allocation5 + $0x280] sm:$0xff]
    %v180 = vld [vmem:[#allocation5 + $0x288] sm:$0xff]
    %v181 = vld [vmem:[#allocation5 + $0x290] sm:$0xff]
    %v182 = vld [vmem:[#allocation5 + $0x298] sm:$0xff]
    %v183 = vld [vmem:[#allocation5 + $0x2a0] sm:$0xff]
    %v184 = vld [vmem:[#allocation5 + $0x2a8] sm:$0xff]
    %v185 = vld [vmem:[#allocation5 + $0x2b0] sm:$0xff]
    %v186 = vld [vmem:[#allocation5 + $0x2b8] sm:$0xff]
    %v187 = vld [vmem:[#allocation5 + $0x2c0] sm:$0xff]
    %v188 = vld [vmem:[#allocation5 + $0x2c8] sm:$0xff]
    %v189 = vld [vmem:[#allocation5 + $0x2d0] sm:$0xff]
    %v190 = vld [vmem:[#allocation5 + $0x2d8] sm:$0xff]
    %v191 = vld [vmem:[#allocation5 + $0x2e0] sm:$0xff]
    %v192 = vld [vmem:[#allocation5 + $0x2e8] sm:$0xff]
    %v193 = vld [vmem:[#allocation5 + $0x2f0] sm:$0xff]
    %v194 = vld [vmem:[#allocation5 + $0x2f8] sm:$0xff]
    %v195 = vld [vmem:[#allocation5 + $0x300] sm:$0xff]
    %v196 = vld [vmem:[#allocation5 + $0x308] sm:$0xff]
    %v197 = vld [vmem:[%s2] sm:$0x1]
    %v199 = vlaneseq
    %v200 = vshrl.u32 %v199, 7
    %v201 = vsub.s32 0, %v200
    %v202 = vrot.slane %v197, %v201
    %vm204 = vcmask 130048
    %v206 = vsel %vm204, %v49, 0
    %v209 = vsel %vm204, %v56, 0
    %v212 = vsel %vm204, %v63, 0
    %v215 = vsel %vm204, %v70, 0
    %v218 = vsel %vm204, %v77, 0
    %v221 = vsel %vm204, %v84, 0
    %v224 = vsel %vm204, %v91, 0
    %v227 = vsel %vm204, %v98, 0
    %229 = vmatprep.subr.mxu0 0.0
    %230 = vmatpush1.msra.mxu0 %v99
    %231 = vmatprep.subr.mxu0 0.0
    %232 = vmatpush1.msra.mxu0 %v100
    %233 = vmatprep.subr.mxu0 0.0
    %234 = vmatpush1.msra.mxu0 %v101
    %235 = vmatprep.subr.mxu0 0.0
    %236 = vmatpush1.msra.mxu0 %v102
    %237 = vmatprep.subr.mxu0 0.0
    %238 = vmatpush1.msra.mxu0 %v103
    %239 = vmatprep.subr.mxu0 0.0
    %240 = vmatpush1.msra.mxu0 %v104
    %241 = vmatprep.subr.mxu0 0.0
    %242 = vmatpush1.msra.mxu0 %v105
    %243 = vmatprep.subr.mxu0 0.0
    %244 = vmatpush1.msra.mxu0 %v106
    %245 = vmatprep.subr.mxu0 0.0
    %246 = vmatpush1.msra.mxu0 %v107
    %247 = vmatprep.subr.mxu0 0.0
    %248 = vmatpush1.msra.mxu0 %v108
    %249 = vmatprep.subr.mxu0 0.0
    %250 = vmatpush1.msra.mxu0 %v109
    %251 = vmatprep.subr.mxu0 0.0
    %252 = vmatpush1.msra.mxu0 %v110
    %253 = vmatprep.subr.mxu0 0.0
    %254 = vmatpush1.msra.mxu0 %v111
    %255 = vmatprep.subr.mxu0 0.0
    %256 = vmatpush1.msra.mxu0 %v112
    %257 = vmatprep.subr.mxu0 0.0
    %258 = vmatpush1.msra.mxu0 %v113
    %259 = vmatprep.subr.mxu0 0.0
    %260 = vmatpush1.msra.mxu0 %v114
    %261 = vmatprep.subr.mxu0 0.0
    %262 = vmatpush1.msra.mxu0 %v115
    %263 = vmatprep.subr.mxu0 0.0
    %264 = vmatpush1.msra.mxu0 %v116
    %265 = vmatprep.subr.mxu0 0.0
    %266 = vmatpush1.msra.mxu0 %v117
    %267 = vmatprep.subr.mxu0 0.0
    %268 = vmatpush1.msra.mxu0 %v118
    %269 = vmatprep.subr.mxu0 0.0
    %270 = vmatpush1.msra.mxu0 %v119
    %271 = vmatprep.subr.mxu0 0.0
    %272 = vmatpush1.msra.mxu0 %v120
    %273 = vmatprep.subr.mxu0 0.0
    %274 = vmatpush1.msra.mxu0 %v121
    %275 = vmatprep.subr.mxu0 0.0
    %276 = vmatpush1.msra.mxu0 %v122
    %277 = vmatprep.subr.mxu0 0.0
    %278 = vmatpush1.msra.mxu0 %v123
    %279 = vmatprep.subr.mxu0 0.0
    %280 = vmatpush1.msra.mxu0 %v124
    %281 = vmatprep.subr.mxu0 0.0
    %282 = vmatpush1.msra.mxu0 %v125
    %283 = vmatprep.subr.mxu0 0.0
    %284 = vmatpush1.msra.mxu0 %v126
    %285 = vmatprep.subr.mxu0 0.0
    %286 = vmatpush1.msra.mxu0 %v127
    %287 = vmatprep.subr.mxu0 0.0
    %288 = vmatpush1.msra.mxu0 %v128
    %289 = vmatprep.subr.mxu0 0.0
    %290 = vmatpush1.msra.mxu0 %v129
    %291 = vmatprep.subr.mxu0 0.0
    %292 = vmatpush1.msra.mxu0 %v130
    %293 = vmatprep.mubr.f32.mxu0 %v44
    %294 = vmatmul.mubr.f32.gmra.mrb[0].mxu0 %v43
    %v295 = vpop.f32.mrb[0].mxu0
    %v296 = vadd.f32 %v202, %v295
    %v297 = vpop.f32.mrb[0].mxu0
    %298 = vmatprep.mubr.f32.mxu0 %v51
    %299 = vmatmul.mubr.f32.gmra.mrb[0].mxu0 %v50
    %v300 = vpop.f32.mrb[0].mxu0
    %v301 = vadd.f32 %v202, %v300
    %v302 = vpop.f32.mrb[0].mxu0
    %303 = vmatprep.mubr.f32.mxu0 %v58
    %304 = vmatmul.mubr.f32.gmra.mrb[0].mxu0 %v57
    %v305 = vpop.f32.mrb[0].mxu0
    %v306 = vadd.f32 %v202, %v305
    %v307 = vpop.f32.mrb[0].mxu0
    %308 = vmatprep.mubr.f32.mxu0 %v65
    %309 = vmatmul.mubr.f32.gmra.mrb[0].mxu0 %v64
    %v310 = vpop.f32.mrb[0].mxu0
    %v311 = vadd.f32 %v202, %v310
    %v312 = vpop.f32.mrb[0].mxu0
    %313 = vmatprep.mubr.f32.mxu0 %v72
    %314 = vmatmul.mubr.f32.gmra.mrb[0].mxu0 %v71
    %v315 = vpop.f32.mrb[0].mxu0
    %v316 = vadd.f32 %v202, %v315
    %v317 = vpop.f32.mrb[0].mxu0
    %318 = vmatprep.mubr.f32.mxu0 %v79
    %319 = vmatmul.mubr.f32.gmra.mrb[0].mxu0 %v78
    %v320 = vpop.f32.mrb[0].mxu0
    %v321 = vadd.f32 %v202, %v320
    %v322 = vpop.f32.mrb[0].mxu0
    %323 = vmatprep.mubr.f32.mxu0 %v86
    %324 = vmatmul.mubr.f32.gmra.mrb[0].mxu0 %v85
    %v325 = vpop.f32.mrb[0].mxu0
    %v326 = vadd.f32 %v202, %v325
    %v327 = vpop.f32.mrb[0].mxu0
    %328 = vmatprep.mubr.f32.mxu0 %v93
    %329 = vmatmul.mubr.f32.gmra.mrb[0].mxu0 %v92
    %v330 = vpop.f32.mrb[0].mxu0
    %v331 = vadd.f32 %v202, %v330
    %v332 = vpop.f32.mrb[0].mxu0
    %333 = vdwg.mxu0
    %334 = vmatprep.subr.mxu0 0.0
    %335 = vmatpush1.msra.mxu0 %v131
    %336 = vmatprep.subr.mxu0 0.0
    %337 = vmatpush1.msra.mxu0 %v132
    %338 = vmatprep.subr.mxu0 0.0
    %339 = vmatpush1.msra.mxu0 %v133
    %340 = vmatprep.subr.mxu0 0.0
    %341 = vmatpush1.msra.mxu0 %v134
    %342 = vmatprep.subr.mxu0 0.0
    %343 = vmatpush1.msra.mxu0 %v135
    %344 = vmatprep.subr.mxu0 0.0
    %345 = vmatpush1.msra.mxu0 %v136
    %346 = vmatprep.subr.mxu0 0.0
    %347 = vmatpush1.msra.mxu0 %v137
    %348 = vmatprep.subr.mxu0 0.0
    %349 = vmatpush1.msra.mxu0 %v138
    %350 = vmatprep.subr.mxu0 0.0
    %351 = vmatpush1.msra.mxu0 %v139
    %352 = vmatprep.subr.mxu0 0.0
    %353 = vmatpush1.msra.mxu0 %v140
    %354 = vmatprep.subr.mxu0 0.0
    %355 = vmatpush1.msra.mxu0 %v141
    %356 = vmatprep.subr.mxu0 0.0
    %357 = vmatpush1.msra.mxu0 %v142
    %358 = vmatprep.subr.mxu0 0.0
    %359 = vmatpush1.msra.mxu0 %v143
    %360 = vmatprep.subr.mxu0 0.0
    %361 = vmatpush1.msra.mxu0 %v144
    %362 = vmatprep.subr.mxu0 0.0
    %363 = vmatpush1.msra.mxu0 %v145
    %364 = vmatprep.subr.mxu0 0.0
    %365 = vmatpush1.msra.mxu0 %v146
    %366 = vmatprep.subr.mxu0 0.0
    %367 = vmatpush1.msra.mxu0 %v147
    %368 = vmatprep.subr.mxu0 0.0
    %369 = vmatpush1.msra.mxu0 %v148
    %370 = vmatprep.subr.mxu0 0.0
    %371 = vmatpush1.msra.mxu0 %v149
    %372 = vmatprep.subr.mxu0 0.0
    %373 = vmatpush1.msra.mxu0 %v150
    %374 = vmatprep.subr.mxu0 0.0
    %375 = vmatpush1.msra.mxu0 %v151
    %376 = vmatprep.subr.mxu0 0.0
    %377 = vmatpush1.msra.mxu0 %v152
    %378 = vmatprep.subr.mxu0 0.0
    %379 = vmatpush1.msra.mxu0 %v153
    %380 = vmatprep.subr.mxu0 0.0
    %381 = vmatpush1.msra.mxu0 %v154
    %382 = vmatprep.subr.mxu0 0.0
    %383 = vmatpush1.msra.mxu0 %v155
    %384 = vmatprep.subr.mxu0 0.0
    %385 = vmatpush1.msra.mxu0 %v156
    %386 = vmatprep.subr.mxu0 0.0
    %387 = vmatpush1.msra.mxu0 %v157
    %388 = vmatprep.subr.mxu0 0.0
    %389 = vmatpush1.msra.mxu0 %v158
    %390 = vmatprep.subr.mxu0 0.0
    %391 = vmatpush1.msra.mxu0 %v159
    %392 = vmatprep.subr.mxu0 0.0
    %393 = vmatpush1.msra.mxu0 %v160
    %394 = vmatprep.subr.mxu0 0.0
    %395 = vmatpush1.msra.mxu0 %v161
    %396 = vmatprep.subr.mxu0 0.0
    %397 = vmatpush1.msra.mxu0 %v162
    %398 = vmatprep.mubr.f32.mxu0 %v46
    %399 = vmatmul.mubr.f32.gmra.mrb[0].mxu0 %v45
    %v400 = vpop.f32.mrb[0].mxu0
    %v401 = vadd.f32 %v296, %v400
    %v402 = vpop.f32.mrb[0].mxu0
    %403 = vmatprep.mubr.f32.mxu0 %v53
    %404 = vmatmul.mubr.f32.gmra.mrb[0].mxu0 %v52
    %v405 = vpop.f32.mrb[0].mxu0
    %v406 = vadd.f32 %v301, %v405
    %v407 = vpop.f32.mrb[0].mxu0
    %408 = vmatprep.mubr.f32.mxu0 %v60
    %409 = vmatmul.mubr.f32.gmra.mrb[0].mxu0 %v59
    %v410 = vpop.f32.mrb[0].mxu0
    %v411 = vadd.f32 %v306, %v410
    %v412 = vpop.f32.mrb[0].mxu0
    %413 = vmatprep.mubr.f32.mxu0 %v67
    %414 = vmatmul.mubr.f32.gmra.mrb[0].mxu0 %v66
    %v415 = vpop.f32.mrb[0].mxu0
    %v416 = vadd.f32 %v311, %v415
    %v417 = vpop.f32.mrb[0].mxu0
    %418 = vmatprep.mubr.f32.mxu0 %v74
    %419 = vmatmul.mubr.f32.gmra.mrb[0].mxu0 %v73
    %v420 = vpop.f32.mrb[0].mxu0
    %v421 = vadd.f32 %v316, %v420
    %v422 = vpop.f32.mrb[0].mxu0
    %423 = vmatprep.mubr.f32.mxu0 %v81
    %424 = vmatmul.mubr.f32.gmra.mrb[0].mxu0 %v80
    %v425 = vpop.f32.mrb[0].mxu0
    %v426 = vadd.f32 %v321, %v425
    %v427 = vpop.f32.mrb[0].mxu0
    %428 = vmatprep.mubr.f32.mxu0 %v88
    %429 = vmatmul.mubr.f32.gmra.mrb[0].mxu0 %v87
    %v430 = vpop.f32.mrb[0].mxu0
    %v431 = vadd.f32 %v326, %v430
    %v432 = vpop.f32.mrb[0].mxu0
    %433 = vmatprep.mubr.f32.mxu0 %v95
    %434 = vmatmul.mubr.f32.gmra.mrb[0].mxu0 %v94
    %v435 = vpop.f32.mrb[0].mxu0
    %v436 = vadd.f32 %v331, %v435
    %v437 = vpop.f32.mrb[0].mxu0
    %438 = vdwg.mxu0
    %439 = vmatprep.subr.mxu0 0.0
    %440 = vmatpush1.msra.mxu0 %v163
    %441 = vmatprep.subr.mxu0 0.0
    %442 = vmatpush1.msra.mxu0 %v164
    %443 = vmatprep.subr.mxu0 0.0
    %444 = vmatpush1.msra.mxu0 %v165
    %445 = vmatprep.subr.mxu0 0.0
    %446 = vmatpush1.msra.mxu0 %v166
    %447 = vmatprep.subr.mxu0 0.0
    %448 = vmatpush1.msra.mxu0 %v167
    %449 = vmatprep.subr.mxu0 0.0
    %450 = vmatpush1.msra.mxu0 %v168
    %451 = vmatprep.subr.mxu0 0.0
    %452 = vmatpush1.msra.mxu0 %v169
    %453 = vmatprep.subr.mxu0 0.0
    %454 = vmatpush1.msra.mxu0 %v170
    %455 = vmatprep.subr.mxu0 0.0
    %456 = vmatpush1.msra.mxu0 %v171
    %457 = vmatprep.subr.mxu0 0.0
    %458 = vmatpush1.msra.mxu0 %v172
    %459 = vmatprep.subr.mxu0 0.0
    %460 = vmatpush1.msra.mxu0 %v173
    %461 = vmatprep.subr.mxu0 0.0
    %462 = vmatpush1.msra.mxu0 %v174
    %463 = vmatprep.subr.mxu0 0.0
    %464 = vmatpush1.msra.mxu0 %v175
    %465 = vmatprep.subr.mxu0 0.0
    %466 = vmatpush1.msra.mxu0 %v176
    %467 = vmatprep.subr.mxu0 0.0
    %468 = vmatpush1.msra.mxu0 %v177
    %469 = vmatprep.subr.mxu0 0.0
    %470 = vmatpush1.msra.mxu0 %v178
    %471 = vmatprep.subr.mxu0 0.0
    %472 = vmatpush1.msra.mxu0 %v179
    %473 = vmatprep.subr.mxu0 0.0
    %474 = vmatpush1.msra.mxu0 %v180
    %475 = vmatprep.subr.mxu0 0.0
    %476 = vmatpush1.msra.mxu0 %v181
    %477 = vmatprep.subr.mxu0 0.0
    %478 = vmatpush1.msra.mxu0 %v182
    %479 = vmatprep.subr.mxu0 0.0
    %480 = vmatpush1.msra.mxu0 %v183
    %481 = vmatprep.subr.mxu0 0.0
    %482 = vmatpush1.msra.mxu0 %v184
    %483 = vmatprep.subr.mxu0 0.0
    %484 = vmatpush1.msra.mxu0 %v185
    %485 = vmatprep.subr.mxu0 0.0
    %486 = vmatpush1.msra.mxu0 %v186
    %487 = vmatprep.subr.mxu0 0.0
    %488 = vmatpush1.msra.mxu0 %v187
    %489 = vmatprep.subr.mxu0 0.0
    %490 = vmatpush1.msra.mxu0 %v188
    %491 = vmatprep.subr.mxu0 0.0
    %492 = vmatpush1.msra.mxu0 %v189
    %493 = vmatprep.subr.mxu0 0.0
    %494 = vmatpush1.msra.mxu0 %v190
    %495 = vmatprep.subr.mxu0 0.0
    %496 = vmatpush1.msra.mxu0 %v191
    %497 = vmatprep.subr.mxu0 0.0
    %498 = vmatpush1.msra.mxu0 %v192
    %499 = vmatprep.subr.mxu0 0.0
    %500 = vmatpush1.msra.mxu0 %v193
    %501 = vmatprep.subr.mxu0 0.0
    %502 = vmatpush1.msra.mxu0 %v194
    %503 = vmatprep.mubr.f32.mxu0 %v48
    %504 = vmatmul.mubr.f32.gmra.mrb[0].mxu0 %v47
    %v505 = vpop.f32.mrb[0].mxu0
    %v506 = vadd.f32 %v401, %v505
    %v507 = vpop.f32.mrb[0].mxu0
    %508 = vmatprep.mubr.f32.mxu0 %v55
    %509 = vmatmul.mubr.f32.gmra.mrb[0].mxu0 %v54
    %v510 = vpop.f32.mrb[0].mxu0
    %v511 = vadd.f32 %v406, %v510
    %v512 = vpop.f32.mrb[0].mxu0
    %513 = vmatprep.mubr.f32.mxu0 %v62
    %514 = vmatmul.mubr.f32.gmra.mrb[0].mxu0 %v61
    %v515 = vpop.f32.mrb[0].mxu0
    %v516 = vadd.f32 %v411, %v515
    %v517 = vpop.f32.mrb[0].mxu0
    %518 = vmatprep.mubr.f32.mxu0 %v69
    %519 = vmatmul.mubr.f32.gmra.mrb[0].mxu0 %v68
    %v520 = vpop.f32.mrb[0].mxu0
    %v521 = vadd.f32 %v416, %v520
    %v522 = vpop.f32.mrb[0].mxu0
    %523 = vmatprep.mubr.f32.mxu0 %v76
    %524 = vmatmul.mubr.f32.gmra.mrb[0].mxu0 %v75
    %v525 = vpop.f32.mrb[0].mxu0
    %v526 = vadd.f32 %v421, %v525
    %v527 = vpop.f32.mrb[0].mxu0
    %528 = vmatprep.mubr.f32.mxu0 %v83
    %529 = vmatmul.mubr.f32.gmra.mrb[0].mxu0 %v82
    %v530 = vpop.f32.mrb[0].mxu0
    %v531 = vadd.f32 %v426, %v530
    %v532 = vpop.f32.mrb[0].mxu0
    %533 = vmatprep.mubr.f32.mxu0 %v90
    %534 = vmatmul.mubr.f32.gmra.mrb[0].mxu0 %v89
    %v535 = vpop.f32.mrb[0].mxu0
    %v536 = vadd.f32 %v431, %v535
    %v537 = vpop.f32.mrb[0].mxu0
    %538 = vmatprep.mubr.f32.mxu0 %v97
    %539 = vmatmul.mubr.f32.gmra.mrb[0].mxu0 %v96
    %v540 = vpop.f32.mrb[0].mxu0
    %v541 = vadd.f32 %v436, %v540
    %v542 = vpop.f32.mrb[0].mxu0
    %543 = vdwg.mxu0
    %544 = vmatprep.subr.mxu0 0.0
    %545 = vmatpush1.msra.mxu0 %v195
    %546 = vmatprep.subr.mxu0 0.0
    %547 = vmatpush1.msra.mxu0 %v196
    %548 = vmatprep.subr.mxu0 0.0
    %549 = vmatpush1.msra.mxu0 0.0
    %550 = vmatprep.subr.mxu0 0.0
    %551 = vmatpush1.msra.mxu0 0.0
    %552 = vmatprep.subr.mxu0 0.0
    %553 = vmatpush1.msra.mxu0 0.0
    %554 = vmatprep.subr.mxu0 0.0
    %555 = vmatpush1.msra.mxu0 0.0
    %556 = vmatprep.subr.mxu0 0.0
    %557 = vmatpush1.msra.mxu0 0.0
    %558 = vmatprep.subr.mxu0 0.0
    %559 = vmatpush1.msra.mxu0 0.0
    %560 = vmatprep.subr.mxu0 0.0
    %561 = vmatpush1.msra.mxu0 0.0
    %562 = vmatprep.subr.mxu0 0.0
    %563 = vmatpush1.msra.mxu0 0.0
    %564 = vmatprep.subr.mxu0 0.0
    %565 = vmatpush1.msra.mxu0 0.0
    %566 = vmatprep.subr.mxu0 0.0
    %567 = vmatpush1.msra.mxu0 0.0
    %568 = vmatprep.subr.mxu0 0.0
    %569 = vmatpush1.msra.mxu0 0.0
    %570 = vmatprep.subr.mxu0 0.0
    %571 = vmatpush1.msra.mxu0 0.0
    %572 = vmatprep.subr.mxu0 0.0
    %573 = vmatpush1.msra.mxu0 0.0
    %574 = vmatprep.subr.mxu0 0.0
    %575 = vmatpush1.msra.mxu0 0.0
    %576 = vmatprep.subr.mxu0 0.0
    %577 = vmatpush1.msra.mxu0 0.0
    %578 = vmatprep.subr.mxu0 0.0
    %579 = vmatpush1.msra.mxu0 0.0
    %580 = vmatprep.subr.mxu0 0.0
    %581 = vmatpush1.msra.mxu0 0.0
    %582 = vmatprep.subr.mxu0 0.0
    %583 = vmatpush1.msra.mxu0 0.0
    %584 = vmatprep.subr.mxu0 0.0
    %585 = vmatpush1.msra.mxu0 0.0
    %586 = vmatprep.subr.mxu0 0.0
    %587 = vmatpush1.msra.mxu0 0.0
    %588 = vmatprep.subr.mxu0 0.0
    %589 = vmatpush1.msra.mxu0 0.0
    %590 = vmatprep.subr.mxu0 0.0
    %591 = vmatpush1.msra.mxu0 0.0
    %592 = vmatprep.subr.mxu0 0.0
    %593 = vmatpush1.msra.mxu0 0.0
    %594 = vmatprep.subr.mxu0 0.0
    %595 = vmatpush1.msra.mxu0 0.0
    %596 = vmatprep.subr.mxu0 0.0
    %597 = vmatpush1.msra.mxu0 0.0
    %598 = vmatprep.subr.mxu0 0.0
    %599 = vmatpush1.msra.mxu0 0.0
    %600 = vmatprep.subr.mxu0 0.0
    %601 = vmatpush1.msra.mxu0 0.0
    %602 = vmatprep.subr.mxu0 0.0
    %603 = vmatpush1.msra.mxu0 0.0
    %604 = vmatprep.subr.mxu0 0.0
    %605 = vmatpush1.msra.mxu0 0.0
    %606 = vmatprep.subr.mxu0 0.0
    %607 = vmatpush1.msra.mxu0 0.0
    %608 = vmatprep.mubr.f32.mxu0 0.0
    %609 = vmatmul.mubr.f32.gmra.mrb[0].mxu0 %v206
    %v610 = vpop.f32.mrb[0].mxu0
    %v611 = vadd.f32 %v506, %v610
    %v612 = vpop.f32.mrb[0].mxu0
    %613 = vmatprep.mubr.f32.mxu0 0.0
    %614 = vmatmul.mubr.f32.gmra.mrb[0].mxu0 %v209
    %v615 = vpop.f32.mrb[0].mxu0
    %v616 = vadd.f32 %v511, %v615
    %v617 = vpop.f32.mrb[0].mxu0
    %618 = vmatprep.mubr.f32.mxu0 0.0
    %619 = vmatmul.mubr.f32.gmra.mrb[0].mxu0 %v212
    %v620 = vpop.f32.mrb[0].mxu0
    %v621 = vadd.f32 %v516, %v620
    %v622 = vpop.f32.mrb[0].mxu0
    %623 = vmatprep.mubr.f32.mxu0 0.0
    %624 = vmatmul.mubr.f32.gmra.mrb[0].mxu0 %v215
    %v625 = vpop.f32.mrb[0].mxu0
    %v626 = vadd.f32 %v521, %v625
    %v627 = vpop.f32.mrb[0].mxu0
    %628 = vmatprep.mubr.f32.mxu0 0.0
    %629 = vmatmul.mubr.f32.gmra.mrb[0].mxu0 %v218
    %v630 = vpop.f32.mrb[0].mxu0
    %v631 = vadd.f32 %v526, %v630
    %v632 = vpop.f32.mrb[0].mxu0
    %633 = vmatprep.mubr.f32.mxu0 0.0
    %634 = vmatmul.mubr.f32.gmra.mrb[0].mxu0 %v221
    %v635 = vpop.f32.mrb[0].mxu0
    %v636 = vadd.f32 %v531, %v635
    %v637 = vpop.f32.mrb[0].mxu0
    %638 = vmatprep.mubr.f32.mxu0 0.0
    %639 = vmatmul.mubr.f32.gmra.mrb[0].mxu0 %v224
    %v640 = vpop.f32.mrb[0].mxu0
    %v641 = vadd.f32 %v536, %v640
    %v642 = vpop.f32.mrb[0].mxu0
    %643 = vmatprep.mubr.f32.mxu0 0.0
    %644 = vmatmul.mubr.f32.gmra.mrb[0].mxu0 %v227
    %v645 = vpop.f32.mrb[0].mxu0
    %v646 = vadd.f32 %v541, %v645
    %v647 = vpop.f32.mrb[0].mxu0
    %648 = vdwg.mxu0
    %649 = vst [vmem:[#allocation7] sm:$0xff] %v611
    %650 = vst [vmem:[#allocation7 + $0x8] sm:$0xff] %v616
    %651 = vst [vmem:[#allocation7 + $0x10] sm:$0xff] %v621
    %652 = vst [vmem:[#allocation7 + $0x18] sm:$0xff] %v626
    %653 = vst [vmem:[#allocation7 + $0x20] sm:$0xff] %v631
    %654 = vst [vmem:[#allocation7 + $0x28] sm:$0xff] %v636
    %655 = vst [vmem:[#allocation7 + $0x30] sm:$0xff] %v641
    %656 = vst [vmem:[#allocation7 + $0x38] sm:$0xff] %v646
    // Predicated region
    $region22: #{tpu_custom_call.1} parent=1 // pred_check
      _
    $region23: #{tpu_custom_call.1} parent=1 // pred_check_branch
      %658 = sbr.rel (0) target = $region25
    $region24: #{tpu_custom_call.1} parent=1 // pred_region
      %s660 = ssub.s32 1024, 1024
      %661 = vsyncadd [#allocation4], %s660
      %s662 = sshll.u32 [#allocation7], 4
      %s663 = int_to_ptr.vmem [resolvable:$true] %s662
      %668 = dma.vmem_to_hbm [thread:$0]  %s663, 1024, %s3, [#allocation4], 128, 128, 8
    $region25: #{tpu_custom_call.1} parent=1 // pred_fallthru
      _
    // Predicated region
    $region26: #{tpu_custom_call.1} parent=1 // pred_check
      _
    $region27: #{tpu_custom_call.1} parent=1 // pred_check_branch
      %670 = sbr.rel (0) target = $region29
    $region28: #{tpu_custom_call.1} parent=1 // pred_region
      %671 = dma.done [#allocation4], 1024
    $region29: #{tpu_custom_call.1} parent=1 // pred_fallthru
      _
    %672 = vsyncpa [#allocation3], 1
    %673 = vsyncpa [#allocation6], 1
    %674 = vsyncpa [#allocation4], 1

</llo_original>
